<compile_context>
chip_gen: v5e
topology: v5e:2x2
jax: 0.10.0
libtpu: 0.0.40
codegen_flags: <defaults>
</compile_context>

<pallas_src>
import functools
import math

import jax
import jax.numpy as jnp
from jax.experimental import pallas as pl
from jax.experimental.pallas import tpu as pltpu

EPS = 1e-3


def _frat_face_kernel(emb_ref, w_ref, invn_ref, label_ref, lab1_ref, lab2_ref,
                      out1_ref, out2_ref, *, s):
    """One class tile: cos0 = (emb @ W0_tile) * inv_norm, clip, scale; splice
    the precomputed margin values into each row's label column."""
    j = pl.program_id(0)
    cos0 = jnp.dot(emb_ref[...], w_ref[...], preferred_element_type=jnp.float32)
    cos0 = cos0 * invn_ref[...]                       # fused l2-normalization
    cos0 = jnp.clip(cos0, -1.0 + EPS, 1.0 - EPS)
    base = cos0 * s                                   # off-label: cos(acos(x)) == x

    b, tc = out1_ref.shape
    col = j * tc + jax.lax.broadcasted_iota(jnp.int32, (b, tc), 1)
    onehot = col == label_ref[...]                    # (B, TC) bool

    out1_ref[...] = jnp.where(onehot, lab1_ref[...], base)
    out2_ref[...] = jnp.where(onehot, lab2_ref[...], base)


def _physical_vmem_bytes():
    """Per-TensorCore physical VMEM (64 MiB on v7x, 128 MiB on v5e/v6e)."""
    try:
        info = pltpu.get_tpu_info()
        return int(getattr(info, "vmem_capacity_bytes", 128 << 20))
    except Exception:
        return 128 << 20


def _working_set_bytes(tile_c, B, E):
    """Pipelined working set for one class tile: double-buffered W0 tile,
    inverse-norm tile and the two f32 output tiles, plus the resident (B, E)
    embeddings and three (B, 1) per-row scalar streams."""
    return (2 * (4 * E * tile_c + 4 * tile_c + 2 * 4 * B * tile_c)
            + 4 * B * E + 3 * 2 * 4 * B)


def _pick_tile_c(C_pad, B, E, budget_bytes, min_steps=4):
    """Largest 128-multiple tile that (a) divides the padded class axis,
    (b) keeps the double-buffered working set under the VMEM budget and
    (c) leaves >= min_steps grid steps (even count preferred) so both v7x
    TensorCores keep a pipelined weight stream."""
    divisors = [t for t in range(128, C_pad + 1, 128) if C_pad % t == 0]
    fit = [t for t in divisors if _working_set_bytes(t, B, E) <= budget_bytes]
    if not fit:
        fit = [128]
    steps_ok = [t for t in fit if C_pad // t >= min_steps]
    if steps_ok:
        even = [t for t in steps_ok if (C_pad // t) % 2 == 0]
        return max(even) if even else max(steps_ok)
    return max(fit)


def frat_face_forward(embeddings, norms, label, kernel,
                      m=0.4, h=0.333, s=64.0, t_alpha=1.0, tile_c=None):
    f32 = jnp.float32
    B, E = embeddings.shape
    _, two, C = kernel.shape
    assert two == 2

    embeddings = embeddings.astype(f32)
    k2d = kernel.astype(f32).reshape(E, 2 * C)             # free row-major reshape
    inv_norm = jax.lax.rsqrt(jnp.sum(k2d * k2d, axis=0))   # (2C,) inverse col norms

    safe_norms = jnp.clip(norms.astype(f32), 0.001, 100.0)          # (B, 1)

    # running-buffer updates (with t_alpha = 1.0 these are pure batch stats)
    mean = jnp.mean(safe_norms)
    std = jnp.std(safe_norms, ddof=1)                                # torch.std is unbiased
    batch_mean = mean * t_alpha + (1.0 - t_alpha) * 20.0
    batch_std = std * t_alpha + (1.0 - t_alpha) * 10.0

    lbl = label.reshape(-1).astype(jnp.int32)
    counts = jax.ops.segment_sum(jnp.ones((B,), f32), lbl, num_segments=C)
    sums = jax.ops.segment_sum(safe_norms[:, 0], lbl, num_segments=C)
    group_mean = jnp.where(counts > 0, sums / jnp.maximum(counts, 1.0), 0.0)
    classwise_init = jnp.full((C,), 20.0, f32)
    classwise_mean = jnp.where(counts > 0,
                               group_mean * t_alpha + (1.0 - t_alpha) * classwise_init,
                               classwise_init)

    margin_scaler = (safe_norms - batch_mean) / (batch_std + EPS)
    margin_scaler = jnp.clip(margin_scaler * h, -1.0, 1.0)           # (B, 1)
    cw_margin_scaler = (safe_norms - classwise_mean[lbl][:, None]) / (batch_std + EPS)
    cw_margin_scaler = jnp.clip(cw_margin_scaler, -1.0, 1.0) * h     # (B, 1)

    # Label-column cosines: the only place the W1 = kernel[:, 1, :] prototypes
    # are read.  B gathered columns + B length-E dot products in plain JAX.
    g0 = jnp.take(k2d, lbl, axis=1).T                 # (B, E)
    g1 = jnp.take(k2d, lbl + C, axis=1).T             # (B, E)
    cos0_lab = jnp.clip(jnp.sum(embeddings * g0, axis=1) * inv_norm[lbl],
                        -1.0 + EPS, 1.0 - EPS)
    cos1_lab = jnp.clip(jnp.sum(embeddings * g1, axis=1) * inv_norm[lbl + C],
                        -1.0 + EPS, 1.0 - EPS)

    g_angular = (-m * margin_scaler)[:, 0]            # (B,) angular margin
    g_add = (m + m * margin_scaler)[:, 0]             # (B,) additive cosine margin

    def _margin(x):
        theta_m = jnp.clip(jnp.arccos(x) + g_angular, EPS, math.pi - EPS)
        return (jnp.cos(theta_m) - g_add) * s

    lab1 = _margin(cos0_lab)[:, None]                 # (B, 1) label value, out1
    lab2 = _margin(cos1_lab)[:, None]                 # (B, 1) label value, out2
    label_col = lbl[:, None]                          # (B, 1) int32

    # --- class-axis padding & VMEM-budget-driven tile selection ---------------
    C_pad = ((C + 127) // 128) * 128
    if C_pad == C:
        # zero-copy path: the BlockSpec only visits the first C columns of the
        # (E, 2C) reshaped parameter, so the W1 half is never DMA'd.
        w0 = k2d
        inv0 = inv_norm.reshape(1, 2 * C)
    else:
        # pad the W0 half (and its inverse norms, with zeros so padded columns
        # stay finite) to keep every class tile lane-dense / 128-aligned; the
        # padded output columns are sliced off below.
        w0 = jnp.pad(k2d[:, :C], ((0, 0), (0, C_pad - C)))
        inv0 = jnp.pad(inv_norm[:C], (0, C_pad - C)).reshape(1, C_pad)

    phys_vmem = _physical_vmem_bytes()
    # generation-aware working-set budget: ~21 MiB/TC on v7x (64 MiB physical),
    # ~42 MiB on v5e/v6e (128 MiB physical), never below 16 MiB.
    budget = min(max(phys_vmem // 3, 16 << 20), 48 << 20)
    if tile_c is None:
        tile_c = _pick_tile_c(C_pad, B, E, budget)
    assert C_pad % tile_c == 0 and tile_c % 128 == 0

    # raise the scoped-VMEM limit explicitly so v5e's 16 MiB default does not
    # force reduced buffering for the chosen tile.
    vmem_limit = int(min(phys_vmem * 3 // 4,
                         max(2 * _working_set_bytes(tile_c, B, E), 32 << 20)))

    cost = pl.CostEstimate(
        flops=2 * B * E * C_pad,
        transcendentals=0,
        bytes_accessed=4 * E * C_pad + 2 * 4 * B * C_pad + 4 * B * E)

    kernel_fn = functools.partial(_frat_face_kernel, s=s)
    out1, out2 = pl.pallas_call(
        kernel_fn,
        out_shape=(jax.ShapeDtypeStruct((B, C_pad), f32),
                   jax.ShapeDtypeStruct((B, C_pad), f32)),
        grid=(C_pad // tile_c,),
        in_specs=[
            pl.BlockSpec((B, E), lambda j: (0, 0)),          # embeddings (resident)
            pl.BlockSpec((E, tile_c), lambda j: (0, j)),     # W0 class tile
            pl.BlockSpec((1, tile_c), lambda j: (0, j)),     # inverse column norms
            pl.BlockSpec((B, 1), lambda j: (0, 0)),          # labels
            pl.BlockSpec((B, 1), lambda j: (0, 0)),          # margin value, W0 branch
            pl.BlockSpec((B, 1), lambda j: (0, 0)),          # margin value, W1 branch
        ],
        out_specs=(pl.BlockSpec((B, tile_c), lambda j: (0, j)),
                   pl.BlockSpec((B, tile_c), lambda j: (0, j))),
        compiler_params=pltpu.CompilerParams(
            dimension_semantics=("parallel",),
            vmem_limit_bytes=vmem_limit),
        cost_estimate=cost,
    )(embeddings, w0, inv0, label_col, lab1, lab2)

    if C_pad != C:
        out1 = out1[:, :C]
        out2 = out2[:, :C]

    # TODO(synk): PyTorch's `register_hook` (backward gradient mask) has no
    # forward-pass equivalent; returning None in its place.
    return out1, out2, cw_margin_scaler, None


def _reference(embeddings, norms, label, kernel, m=0.4, h=0.333, s=64.0):
    """Pure-JAX reference mirroring the PyTorch forward (uses arccos/cos)."""
    B = embeddings.shape[0]
    C = kernel.shape[2]
    kn = kernel / jnp.linalg.norm(kernel, axis=0, keepdims=True)
    cosine = jnp.clip(jnp.einsum('be,etc->btc', embeddings, kn), -1 + EPS, 1 - EPS)
    safe_norms = jnp.clip(norms, 0.001, 100.0)
    batch_mean = jnp.mean(safe_norms)
    batch_std = jnp.std(safe_norms, ddof=1)
    lbl = label.reshape(-1)
    counts = jax.ops.segment_sum(jnp.ones((B,), jnp.float32), lbl, num_segments=C)
    sums = jax.ops.segment_sum(safe_norms[:, 0], lbl, num_segments=C)
    group_mean = jnp.where(counts > 0, sums / jnp.maximum(counts, 1.0), 20.0)
    margin_scaler = jnp.clip((safe_norms - batch_mean) / (batch_std + EPS) * h, -1, 1)
    cw = jnp.clip((safe_norms - group_mean[lbl][:, None]) / (batch_std + EPS), -1, 1) * h
    onehot = jax.nn.one_hot(lbl, C, dtype=jnp.float32)
    origin_m_arc = onehot * (-m * margin_scaler)
    origin_m_cos = onehot * (m + m * margin_scaler)
    w1 = cosine[:, 0, :]
    w2 = jnp.where(onehot > 0, cosine[:, 1, :], w1)

    def tf(x):
        theta_m = jnp.clip(jnp.arccos(x) + origin_m_arc, EPS, math.pi - EPS)
        return (jnp.cos(theta_m) - origin_m_cos) * s

    return tf(w1), tf(w2), cw


def _check(B, E, C, seed):
    key = jax.random.PRNGKey(seed)
    k1, k2, k3, k4 = jax.random.split(key, 4)

    # deterministic synthetic parameter init (Parameter(embedding_size, 2, classnum))
    kern = jax.random.uniform(k1, (E, 2, C), jnp.float32, -1.0, 1.0)
    emb = jax.random.normal(k2, (B, E), jnp.float32)
    emb = emb / jnp.linalg.norm(emb, axis=1, keepdims=True)
    norms = jax.random.uniform(k3, (B, 1), jnp.float32, 5.0, 35.0)
    label = jax.random.randint(k4, (B,), 0, C, jnp.int32)

    out1, out2, cw, _ = frat_face_forward(emb, norms, label, kern)
    jax.block_until_ready((out1, out2, cw))

    ref1, ref2, ref_cw = _reference(emb, norms, label, kern)
    assert out1.shape == (B, C) and out2.shape == (B, C) and cw.shape == (B, 1)
    assert jnp.allclose(out1, ref1, atol=0.1, rtol=1e-3)
    assert jnp.allclose(out2, ref2, atol=0.1, rtol=1e-3)
    assert jnp.allclose(cw, ref_cw, atol=1e-4, rtol=1e-4)


if __name__ == "__main__":
    # 128-aligned class count: zero-copy W0 stream.
    _check(B=8, E=32, C=512, seed=0)
    # non-128-divisible class count: exercises the class-axis padding path.
    _check(B=4, E=16, C=450, seed=0)
    print("KERNEL_OK")
</pallas_src>

<mosaic_0001>
module attributes {stable_mosaic.version = 11 : i64} {
  func.func @_frat_face_kernel(%arg0: i32, %arg1: memref<8x32xf32, #tpu.memory_space<vmem>>, %arg2: memref<32x128xf32, #tpu.memory_space<vmem>>, %arg3: memref<1x128xf32, #tpu.memory_space<vmem>>, %arg4: memref<8x1xi32, #tpu.memory_space<vmem>>, %arg5: memref<8x1xf32, #tpu.memory_space<vmem>>, %arg6: memref<8x1xf32, #tpu.memory_space<vmem>>, %arg7: memref<8x128xf32, #tpu.memory_space<vmem>>, %arg8: memref<8x128xf32, #tpu.memory_space<vmem>>) attributes {dimension_semantics = [#tpu.dimension_semantics<parallel>], iteration_bounds = array<i64: 4>, scalar_prefetch = 0 : i64, scratch_operands = 0 : i64, tpu.core_type = #tpu.core_type<tc>, window_params = [{pipeline_mode = #tpu.pipeline_mode<synchronous>, transform_indices = @transform_0, window_bounds = array<i64: 8, 32>}, {transform_indices = @transform_1, window_bounds = array<i64: 32, 128>}, {transform_indices = @transform_2, window_bounds = array<i64: 1, 128>}, {pipeline_mode = #tpu.pipeline_mode<synchronous>, transform_indices = @transform_3, window_bounds = array<i64: 8, 1>}, {pipeline_mode = #tpu.pipeline_mode<synchronous>, transform_indices = @transform_4, window_bounds = array<i64: 8, 1>}, {pipeline_mode = #tpu.pipeline_mode<synchronous>, transform_indices = @transform_5, window_bounds = array<i64: 8, 1>}, {transform_indices = @transform_6, window_bounds = array<i64: 8, 128>}, {transform_indices = @transform_7, window_bounds = array<i64: 8, 128>}]} {
    %c0 = arith.constant 0 : index
    %c0_0 = arith.constant 0 : index
    %0 = vector.load %arg1[%c0, %c0_0] : memref<8x32xf32, #tpu.memory_space<vmem>>, vector<8x32xf32>
    %c0_1 = arith.constant 0 : index
    %c0_2 = arith.constant 0 : index
    %1 = vector.load %arg2[%c0_1, %c0_2] : memref<32x128xf32, #tpu.memory_space<vmem>>, vector<32x128xf32>
    %cst = arith.constant dense<0.000000e+00> : vector<8x128xf32>
    %2 = tpu.matmul %0, %1, %cst {dimension_numbers = #tpu.dot_dimension_numbers<[1], [0], [0], [1], [0, 0, 1, 1], [], []>} : vector<8x32xf32>, vector<32x128xf32>, vector<8x128xf32> -> vector<8x128xf32>
    %c0_3 = arith.constant 0 : index
    %c0_4 = arith.constant 0 : index
    %3 = vector.load %arg3[%c0_3, %c0_4] : memref<1x128xf32, #tpu.memory_space<vmem>>, vector<1x128xf32>
    %4 = vector.broadcast %3 : vector<1x128xf32> to vector<8x128xf32>
    %5 = arith.mulf %2, %4 : vector<8x128xf32>
    %cst_5 = arith.constant -9.990000e-01 : f32
    %cst_6 = arith.constant 9.990000e-01 : f32
    %6 = vector.broadcast %cst_5 : f32 to vector<8x128xf32>
    %7 = arith.maximumf %6, %5 : vector<8x128xf32>
    %8 = vector.broadcast %cst_6 : f32 to vector<8x128xf32>
    %9 = arith.minimumf %8, %7 : vector<8x128xf32>
    %cst_7 = arith.constant 6.400000e+01 : f32
    %10 = vector.broadcast %cst_7 : f32 to vector<8x128xf32>
    %11 = arith.mulf %9, %10 : vector<8x128xf32>
    %c128_i32 = arith.constant 128 : i32
    %12 = arith.muli %arg0, %c128_i32 : i32
    %13 = tpu.iota {dimensions = array<i32: 1>} : vector<8x128xi32>
    %14 = vector.broadcast %12 : i32 to vector<8x128xi32>
    %15 = arith.addi %14, %13 : vector<8x128xi32>
    %c0_8 = arith.constant 0 : index
    %c0_9 = arith.constant 0 : index
    %16 = vector.load %arg4[%c0_8, %c0_9] : memref<8x1xi32, #tpu.memory_space<vmem>>, vector<8x1xi32>
    %17 = vector.broadcast %16 : vector<8x1xi32> to vector<8x128xi32>
    %18 = arith.cmpi eq, %15, %17 : vector<8x128xi32>
    %c0_10 = arith.constant 0 : index
    %c0_11 = arith.constant 0 : index
    %19 = vector.load %arg5[%c0_10, %c0_11] : memref<8x1xf32, #tpu.memory_space<vmem>>, vector<8x1xf32>
    %20 = vector.shape_cast %19 : vector<8x1xf32> to vector<8x1xf32>
    %21 = vector.broadcast %20 : vector<8x1xf32> to vector<8x128xf32>
    %22 = arith.select %18, %21, %11 : vector<8x128xi1>, vector<8x128xf32>
    %c0_12 = arith.constant 0 : index
    %c0_13 = arith.constant 0 : index
    %23 = vector.load %arg7[%c0_12, %c0_13] : memref<8x128xf32, #tpu.memory_space<vmem>>, vector<8x128xf32>
    tpu.vector_store %arg7[%c0_12, %c0_13], %22 {strides = array<i32>} : memref<8x128xf32, #tpu.memory_space<vmem>>, vector<8x128xf32>,
    %c0_14 = arith.constant 0 : index
    %c0_15 = arith.constant 0 : index
    %24 = vector.load %arg6[%c0_14, %c0_15] : memref<8x1xf32, #tpu.memory_space<vmem>>, vector<8x1xf32>
    %25 = vector.shape_cast %24 : vector<8x1xf32> to vector<8x1xf32>
    %26 = vector.broadcast %25 : vector<8x1xf32> to vector<8x128xf32>
    %27 = arith.select %18, %26, %11 : vector<8x128xi1>, vector<8x128xf32>
    %c0_16 = arith.constant 0 : index
    %c0_17 = arith.constant 0 : index
    %28 = vector.load %arg8[%c0_16, %c0_17] : memref<8x128xf32, #tpu.memory_space<vmem>>, vector<8x128xf32>
    tpu.vector_store %arg8[%c0_16, %c0_17], %27 {strides = array<i32>} : memref<8x128xf32, #tpu.memory_space<vmem>>, vector<8x128xf32>,
    return
  }
  func.func @transform_0(%arg0: i32) -> (i32, i32) {
    %c0_i32 = arith.constant 0 : i32
    %c0_i32_0 = arith.constant 0 : i32
    %c0_i32_1 = arith.constant 0 : i32
    return %c0_i32, %c0_i32_0 : i32, i32
  }
  func.func @transform_1(%arg0: i32) -> (i32, i32) {
    %c0_i32 = arith.constant 0 : i32
    %c0_i32_0 = arith.constant 0 : i32
    return %c0_i32, %arg0 : i32, i32
  }
  func.func @transform_2(%arg0: i32) -> (i32, i32) {
    %c0_i32 = arith.constant 0 : i32
    %c0_i32_0 = arith.constant 0 : i32
    return %c0_i32, %arg0 : i32, i32
  }
  func.func @transform_3(%arg0: i32) -> (i32, i32) {
    %c0_i32 = arith.constant 0 : i32
    %c0_i32_0 = arith.constant 0 : i32
    %c0_i32_1 = arith.constant 0 : i32
    return %c0_i32, %c0_i32_0 : i32, i32
  }
  func.func @transform_4(%arg0: i32) -> (i32, i32) {
    %c0_i32 = arith.constant 0 : i32
    %c0_i32_0 = arith.constant 0 : i32
    %c0_i32_1 = arith.constant 0 : i32
    return %c0_i32, %c0_i32_0 : i32, i32
  }
  func.func @transform_5(%arg0: i32) -> (i32, i32) {
    %c0_i32 = arith.constant 0 : i32
    %c0_i32_0 = arith.constant 0 : i32
    %c0_i32_1 = arith.constant 0 : i32
    return %c0_i32, %c0_i32_0 : i32, i32
  }
  func.func @transform_6(%arg0: i32) -> (i32, i32) {
    %c0_i32 = arith.constant 0 : i32
    %c0_i32_0 = arith.constant 0 : i32
    return %c0_i32, %arg0 : i32, i32
  }
  func.func @transform_7(%arg0: i32) -> (i32, i32) {
    %c0_i32 = arith.constant 0 : i32
    %c0_i32_0 = arith.constant 0 : i32
    return %c0_i32, %arg0 : i32, i32
  }
}

</mosaic_0001>

<llo_original>
// kernel: tpu_custom_call.1
$region0: #{tpu_custom_call.1}
  #allocation0 [shape = 'u32[]', space=smem, size = 0x4, offset = 0x4, fixed_abs, tag = 'smem constant byte address 0x4 - core index']
  #allocation1 [shape = 'u32[72,128]{1,0:T(1,128)}', space=vmem, size = 0x9000, scoped, tag = 'internal scratch']
  %s0 = inlined_call_operand.vmem [shape: f32[8,32], index: 0, kind: input, shape index: {}]
  %s1 = inlined_call_operand.hbm [shape: f32[32,1024], index: 1, kind: input, shape index: {}]
  %s2 = inlined_call_operand.vmem [shape: f32[1,1024], index: 2, kind: input, shape index: {}]
  %s3 = inlined_call_operand.vmem [shape: s32[8,1], index: 3, kind: input, shape index: {}]
  %s4 = inlined_call_operand.vmem [shape: f32[8,1], index: 4, kind: input, shape index: {}]
  %s5 = inlined_call_operand.vmem [shape: f32[8,1], index: 5, kind: input, shape index: {}]
  %s6 = inlined_call_operand.hbm [shape: f32[8,512], index: 6, kind: output, shape index: {0}]
  %s7 = inlined_call_operand.hbm [shape: f32[8,512], index: 7, kind: output, shape index: {1}]
  %8 = xla_tuple %s6, %s7
  %s9 = sld [smem:[#allocation0]]
  $region69: #{tpu_custom_call.1} parent=0
    _
  %s11 = ssub.s32 1, %s9
  %s12 = scalar_select 0, %s11, %s9
  $region1: #{tpu_custom_call.1} parent=0
    #allocation2 [shape = 'u8[32768]{0}', space=vmem, size = 0x8000, scoped, tag = 'input window, operand 1']
    #allocation3 [shape = 's32[2]{0}', space=sflag, size = 0x8, scoped, tag = 'scoped memory for tpu_custom_call.1']
    #allocation4 [shape = 's32[2]{0}', space=sflag, size = 0x8, scoped, tag = 'scoped memory for tpu_custom_call.1']
    #allocation5 [shape = 'u8[8192]{0}', space=vmem, size = 0x2000, scoped, tag = 'output window, operand 0']
    #allocation6 [shape = 'u8[8192]{0}', space=vmem, size = 0x2000, scoped, tag = 'output window, operand 1']
    #allocation7 [shape = 's32[2]{0}', space=sflag, size = 0x8, scoped, tag = 'scoped memory for tpu_custom_call.1']
    %13 = vsyncpa [#allocation3], 0
    %s14 = scalar_lea.sflag [#allocation3], 1
    %15 = vsyncpa %s14, 0
    %16 = vsyncpa [#allocation4], 0
    %s17 = scalar_lea.sflag [#allocation4], 1
    %18 = vsyncpa %s17, 0
    %19 = vsyncpa [#allocation7], 0
    %s20 = scalar_lea.sflag [#allocation7], 1
    %21 = vsyncpa %s20, 0
    loop: start=0, step=1, limit=6
    $region2: #{tpu_custom_call.1} parent=1 // loop_pre_header
      _
    $region3: #{tpu_custom_call.1} parent=1 // loop_header
      %s23 = sphi 0, %s27
      %p24 = scmp.ge.s32.totalorder %s23, 6
      %s31 = sphi 0, %s31
      %s33 = sphi 0, %s31
      %s34 = sphi 0, %s33
      %s48 = sphi 0, %s34
      %s54 = sphi 0, %s56
      %s57 = sphi 0, %s54
      %s58 = sphi 0, %s57
      %s74 = sphi 0, %s58
      %s80 = sphi 0, %s82
      %s83 = sphi 0, %s80
      %s84 = sphi 0, %s83
      %s100 = sphi 0, %s84
      %s104 = sphi 0, %s104
      %s106 = sphi 0, %s104
      %s107 = sphi 0, %s106
      %s121 = sphi 0, %s107
      %s125 = sphi 0, %s125
      %s127 = sphi 0, %s125
      %s128 = sphi 0, %s127
      %s142 = sphi 0, %s128
      %s146 = sphi 0, %s146
      %s148 = sphi 0, %s146
      %s149 = sphi 0, %s148
      %s163 = sphi 0, %s149
      %s169 = sphi 0, %s171
      %s172 = sphi 0, %s169
      %s173 = sphi 0, %s172
      %s189 = sphi 0, %s173
      %s195 = sphi 0, %s197
      %s198 = sphi 0, %s195
      %s199 = sphi 0, %s198
      %s215 = sphi 0, %s199
    $region4: #{tpu_custom_call.1} parent=1 // loop_header_branch
      %26 = sbr.rel (%p24) target = $region8
    $region5: #{tpu_custom_call.1} parent=1 // loop_body
      %s28 = ssub.s32 %s23, 1
      %s29 = ssub.s32 %s23, 2
      %s30 = sadd.s32 %s23, 1
      %s32 = sadd.s32 %s31, 1
      %p35 = scmp.eq.s32.totalorder %s23, 3
      %p36 = scmp.ne.s32.totalorder %s31, %s33
      %p37 = scmp.eq.s32.totalorder %s23, 0
      %p38 = por %p36, %p37
      %p39 = scmp.ne.s32.totalorder %s31, %s33
      %p40 = scmp.eq.s32.totalorder %s28, 3
      %p41 = por %p39, %p40
      %p42 = scmp.ne.s32.totalorder %s33, %s34
      %p43 = scmp.eq.s32.totalorder %s28, 0
      %p44 = por %p42, %p43
      %p45 = scmp.ne.s32.totalorder %s33, %s34
      %p46 = scmp.eq.s32.totalorder %s29, 3
      %p47 = por %p45, %p46
      %p49 = scmp.ne.s32.totalorder %s34, %s48
      %p50 = scmp.eq.s32.totalorder %s29, 0
      %p51 = por %p49, %p50
      %s52 = ssub.s32 %s23, %s30
      %p53 = scmp.eq.s32.totalorder %s52, 0
      %s55 = sadd.s32 %s54, 1
      %s56 = scalar_select %p53, %s54, %s55
      %p59 = pneg %p53
      %p60 = scmp.eq.s32.totalorder %s23, 3
      %p61 = por %p59, %p60
      %p62 = scmp.ne.s32.totalorder %s54, %s57
      %p63 = scmp.eq.s32.totalorder %s23, 0
      %p64 = por %p62, %p63
      %p65 = scmp.ne.s32.totalorder %s54, %s57
      %p66 = scmp.eq.s32.totalorder %s28, 3
      %p67 = por %p65, %p66
      %p68 = scmp.ne.s32.totalorder %s57, %s58
      %p69 = scmp.eq.s32.totalorder %s28, 0
      %p70 = por %p68, %p69
      %p71 = scmp.ne.s32.totalorder %s57, %s58
      %p72 = scmp.eq.s32.totalorder %s29, 3
      %p73 = por %p71, %p72
      %p75 = scmp.ne.s32.totalorder %s58, %s74
      %p76 = scmp.eq.s32.totalorder %s29, 0
      %p77 = por %p75, %p76
      %s78 = ssub.s32 %s23, %s30
      %p79 = scmp.eq.s32.totalorder %s78, 0
      %s81 = sadd.s32 %s80, 1
      %s82 = scalar_select %p79, %s80, %s81
      %p85 = pneg %p79
      %p86 = scmp.eq.s32.totalorder %s23, 3
      %p87 = por %p85, %p86
      %p88 = scmp.ne.s32.totalorder %s80, %s83
      %p89 = scmp.eq.s32.totalorder %s23, 0
      %p90 = por %p88, %p89
      %p91 = scmp.ne.s32.totalorder %s80, %s83
      %p92 = scmp.eq.s32.totalorder %s28, 3
      %p93 = por %p91, %p92
      %p94 = scmp.ne.s32.totalorder %s83, %s84
      %p95 = scmp.eq.s32.totalorder %s28, 0
      %p96 = por %p94, %p95
      %p97 = scmp.ne.s32.totalorder %s83, %s84
      %p98 = scmp.eq.s32.totalorder %s29, 3
      %p99 = por %p97, %p98
      %p101 = scmp.ne.s32.totalorder %s84, %s100
      %p102 = scmp.eq.s32.totalorder %s29, 0
      %p103 = por %p101, %p102
      %s105 = sadd.s32 %s104, 1
      %p108 = scmp.eq.s32.totalorder %s23, 3
      %p109 = scmp.ne.s32.totalorder %s104, %s106
      %p110 = scmp.eq.s32.totalorder %s23, 0
      %p111 = por %p109, %p110
      %p112 = scmp.ne.s32.totalorder %s104, %s106
      %p113 = scmp.eq.s32.totalorder %s28, 3
      %p114 = por %p112, %p113
      %p115 = scmp.ne.s32.totalorder %s106, %s107
      %p116 = scmp.eq.s32.totalorder %s28, 0
      %p117 = por %p115, %p116
      %p118 = scmp.ne.s32.totalorder %s106, %s107
      %p119 = scmp.eq.s32.totalorder %s29, 3
      %p120 = por %p118, %p119
      %p122 = scmp.ne.s32.totalorder %s107, %s121
      %p123 = scmp.eq.s32.totalorder %s29, 0
      %p124 = por %p122, %p123
      %s126 = sadd.s32 %s125, 1
      %p129 = scmp.eq.s32.totalorder %s23, 3
      %p130 = scmp.ne.s32.totalorder %s125, %s127
      %p131 = scmp.eq.s32.totalorder %s23, 0
      %p132 = por %p130, %p131
      %p133 = scmp.ne.s32.totalorder %s125, %s127
      %p134 = scmp.eq.s32.totalorder %s28, 3
      %p135 = por %p133, %p134
      %p136 = scmp.ne.s32.totalorder %s127, %s128
      %p137 = scmp.eq.s32.totalorder %s28, 0
      %p138 = por %p136, %p137
      %p139 = scmp.ne.s32.totalorder %s127, %s128
      %p140 = scmp.eq.s32.totalorder %s29, 3
      %p141 = por %p139, %p140
      %p143 = scmp.ne.s32.totalorder %s128, %s142
      %p144 = scmp.eq.s32.totalorder %s29, 0
      %p145 = por %p143, %p144
      %s147 = sadd.s32 %s146, 1
      %p150 = scmp.eq.s32.totalorder %s23, 3
      %p151 = scmp.ne.s32.totalorder %s146, %s148
      %p152 = scmp.eq.s32.totalorder %s23, 0
      %p153 = por %p151, %p152
      %p154 = scmp.ne.s32.totalorder %s146, %s148
      %p155 = scmp.eq.s32.totalorder %s28, 3
      %p156 = por %p154, %p155
      %p157 = scmp.ne.s32.totalorder %s148, %s149
      %p158 = scmp.eq.s32.totalorder %s28, 0
      %p159 = por %p157, %p158
      %p160 = scmp.ne.s32.totalorder %s148, %s149
      %p161 = scmp.eq.s32.totalorder %s29, 3
      %p162 = por %p160, %p161
      %p164 = scmp.ne.s32.totalorder %s149, %s163
      %p165 = scmp.eq.s32.totalorder %s29, 0
      %p166 = por %p164, %p165
      %s167 = ssub.s32 %s23, %s30
      %p168 = scmp.eq.s32.totalorder %s167, 0
      %s170 = sadd.s32 %s169, 1
      %s171 = scalar_select %p168, %s169, %s170
      %p174 = pneg %p168
      %p175 = scmp.eq.s32.totalorder %s23, 3
      %p176 = por %p174, %p175
      %p177 = scmp.ne.s32.totalorder %s169, %s172
      %p178 = scmp.eq.s32.totalorder %s23, 0
      %p179 = por %p177, %p178
      %p180 = scmp.ne.s32.totalorder %s169, %s172
      %p181 = scmp.eq.s32.totalorder %s28, 3
      %p182 = por %p180, %p181
      %p183 = scmp.ne.s32.totalorder %s172, %s173
      %p184 = scmp.eq.s32.totalorder %s28, 0
      %p185 = por %p183, %p184
      %p186 = scmp.ne.s32.totalorder %s172, %s173
      %p187 = scmp.eq.s32.totalorder %s29, 3
      %p188 = por %p186, %p187
      %p190 = scmp.ne.s32.totalorder %s173, %s189
      %p191 = scmp.eq.s32.totalorder %s29, 0
      %p192 = por %p190, %p191
      %s193 = ssub.s32 %s23, %s30
      %p194 = scmp.eq.s32.totalorder %s193, 0
      %s196 = sadd.s32 %s195, 1
      %s197 = scalar_select %p194, %s195, %s196
      %p200 = pneg %p194
      %p201 = scmp.eq.s32.totalorder %s23, 3
      %p202 = por %p200, %p201
      %p203 = scmp.ne.s32.totalorder %s195, %s198
      %p204 = scmp.eq.s32.totalorder %s23, 0
      %p205 = por %p203, %p204
      %p206 = scmp.ne.s32.totalorder %s195, %s198
      %p207 = scmp.eq.s32.totalorder %s28, 3
      %p208 = por %p206, %p207
      %p209 = scmp.ne.s32.totalorder %s198, %s199
      %p210 = scmp.eq.s32.totalorder %s28, 0
      %p211 = por %p209, %p210
      %p212 = scmp.ne.s32.totalorder %s198, %s199
      %p213 = scmp.eq.s32.totalorder %s29, 3
      %p214 = por %p212, %p213
      %p216 = scmp.ne.s32.totalorder %s199, %s215
      %p217 = scmp.eq.s32.totalorder %s29, 0
      %p218 = por %p216, %p217
      %p219 = scmp.le.s32.totalorder 1, %s23
      %p220 = scmp.lt.s32.totalorder %s23, 5
      %p221 = pnand %p219, %p220
      %p222 = pneg %p221
      // Predicated region
      $region9: #{tpu_custom_call.1} parent=5 // pred_check
        _
      $region10: #{tpu_custom_call.1} parent=5 // pred_check_branch
        %224 = sbr.rel (%p221) target = $region12
      $region11: #{tpu_custom_call.1} parent=5 // pred_region
        %s225 = ssub.s32 %s23, 1
        // Predicated region
        $region13: #{tpu_custom_call.1} parent=11 // pred_check
          %p226 = pneg %p44
        $region14: #{tpu_custom_call.1} parent=11 // pred_check_branch
          %228 = sbr.rel (%p226) target = $region16
        $region15: #{tpu_custom_call.1} parent=11 // pred_region
          _
        $region16: #{tpu_custom_call.1} parent=11 // pred_fallthru
          _
        // Predicated region
        $region17: #{tpu_custom_call.1} parent=11 // pred_check
          %p229 = pneg %p117
        $region18: #{tpu_custom_call.1} parent=11 // pred_check_branch
          %231 = sbr.rel (%p229) target = $region20
        $region19: #{tpu_custom_call.1} parent=11 // pred_region
          _
        $region20: #{tpu_custom_call.1} parent=11 // pred_fallthru
          _
        // Predicated region
        $region21: #{tpu_custom_call.1} parent=11 // pred_check
          %p232 = pneg %p138
        $region22: #{tpu_custom_call.1} parent=11 // pred_check_branch
          %234 = sbr.rel (%p232) target = $region24
        $region23: #{tpu_custom_call.1} parent=11 // pred_region
          _
        $region24: #{tpu_custom_call.1} parent=11 // pred_fallthru
          _
        // Predicated region
        $region25: #{tpu_custom_call.1} parent=11 // pred_check
          %p235 = pneg %p159
        $region26: #{tpu_custom_call.1} parent=11 // pred_check_branch
          %237 = sbr.rel (%p235) target = $region28
        $region27: #{tpu_custom_call.1} parent=11 // pred_region
          _
        $region28: #{tpu_custom_call.1} parent=11 // pred_fallthru
          _
      $region12: #{tpu_custom_call.1} parent=5 // pred_fallthru
        _
      %p238 = scmp.lt.s32.totalorder %s23, 4
      // Predicated region
      $region29: #{tpu_custom_call.1} parent=5 // pred_check
        %p239 = pneg %p238
      $region30: #{tpu_custom_call.1} parent=5 // pred_check_branch
        %241 = sbr.rel (%p239) target = $region32
      $region31: #{tpu_custom_call.1} parent=5 // pred_region
        // Predicated region
        $region33: #{tpu_custom_call.1} parent=31 // pred_check
          %p242 = pneg %p64
        $region34: #{tpu_custom_call.1} parent=31 // pred_check_branch
          %244 = sbr.rel (%p242) target = $region36
        $region35: #{tpu_custom_call.1} parent=31 // pred_region
          %s245 = sand.u32 %s54, 1
          %s246 = scalar_lea.sflag [#allocation3], %s245
          %s247 = sand.u32 %s54, 1
          %s248 = smul.addr %s247, 32
          %s249 = scalar_lea.vmem [#allocation2], %s248
          %251 = vsyncadd %s246, 0
          %s252 = smul.addr %s23, 8
          %s253 = scalar_lea.hbm %s1, %s252
          %s254 = sshll.u32 %s253, 4
          %s255 = int_to_ptr.hbm [resolvable:$true] %s254
          %s256 = sshll.u32 %s249, 4
          %s257 = int_to_ptr.vmem [resolvable:$true] %s256
          %262 = dma.hbm_to_vmem [thread:$0]  %s255, 512, %s257, %s246, 1024, 128, 8
        $region36: #{tpu_custom_call.1} parent=31 // pred_fallthru
          _
        // Predicated region
        $region37: #{tpu_custom_call.1} parent=31 // pred_check
          %p263 = pneg %p90
        $region38: #{tpu_custom_call.1} parent=31 // pred_check_branch
          %265 = sbr.rel (%p263) target = $region40
        $region39: #{tpu_custom_call.1} parent=31 // pred_region
          %p266 = scmp.lt.s32.totalorder %s23, 7
          %s267 = scalar_select %p266, %s23, 7
          %s268 = scalar_lea.vmem %s2, %s267
        $region40: #{tpu_custom_call.1} parent=31 // pred_fallthru
          _
      $region32: #{tpu_custom_call.1} parent=5 // pred_fallthru
        _
      %p269 = scmp.le.s32.totalorder 1, %s23
      %p270 = scmp.lt.s32.totalorder %s23, 5
      %p271 = pnand %p269, %p270
      %p272 = pneg %p271
      // Predicated region
      $region41: #{tpu_custom_call.1} parent=5 // pred_check
        _
      $region42: #{tpu_custom_call.1} parent=5 // pred_check_branch
        %274 = sbr.rel (%p271) target = $region44
      $region43: #{tpu_custom_call.1} parent=5 // pred_region
        %s275 = ssub.s32 %s23, 1
        %s276 = sand.u32 %s57, 1
        %s277 = scalar_lea.sflag [#allocation3], %s276
        %s278 = sand.u32 %s57, 1
        %s279 = smul.addr %s278, 32
        %s280 = scalar_lea.vmem [#allocation2], %s279
        // Predicated region
        $region45: #{tpu_custom_call.1} parent=43 // pred_check
          %p281 = pneg %p70
        $region46: #{tpu_custom_call.1} parent=43 // pred_check_branch
          %283 = sbr.rel (%p281) target = $region48
        $region47: #{tpu_custom_call.1} parent=43 // pred_region
          %285 = dma.done %s277, 512
        $region48: #{tpu_custom_call.1} parent=43 // pred_fallthru
          _
        %p286 = pneg %p44
        %p287 = pneg %p41
        %s288 = sand.u32 %s57, 1
        %s289 = scalar_lea.sflag [#allocation3], %s288
        %s290 = sand.u32 %s57, 1
        %s291 = smul.addr %s290, 32
        %s292 = scalar_lea.vmem [#allocation2], %s291
        %p293 = pneg %p70
        %p294 = pneg %p67
        %p295 = scmp.lt.s32.totalorder %s28, 7
        %s296 = scalar_select %p295, %s28, 7
        %s297 = scalar_lea.vmem %s2, %s296
        %p298 = pneg %p96
        %p299 = pneg %p93
        %p300 = pneg %p117
        %p301 = pneg %p114
        %p302 = pneg %p138
        %p303 = pneg %p135
        %p304 = pneg %p159
        %p305 = pneg %p156
        %p306 = pneg %p185
        %p307 = pneg %p182
        %s308 = sand.u32 %s172, 1
        %s309 = scalar_lea.sflag [#allocation4], %s308
        %s310 = sand.u32 %s172, 1
        %s311 = smul.addr %s310, 8
        %s312 = scalar_lea.vmem [#allocation5], %s311
        %p313 = pneg %p211
        %p314 = pneg %p208
        %s315 = sand.u32 %s198, 1
        %s316 = scalar_lea.sflag [#allocation7], %s315
        %s317 = sand.u32 %s198, 1
        %s318 = smul.addr %s317, 8
        %s319 = scalar_lea.vmem [#allocation6], %s318
        %p320 = scmp.lt.s32.totalorder %s28, 7
        %s321 = scalar_select %p320, %s28, 7
        %s322 = scalar_lea.vmem %s2, %s321
        %v323 = vld [vmem:[%s0] sm:$0xff]
        %v324 = vld [vmem:[%s280] sm:$0xff]
        %v325 = vld [vmem:[%s280 + $0x8] sm:$0xff]
        %v326 = vld [vmem:[%s280 + $0x10] sm:$0xff]
        %v327 = vld [vmem:[%s280 + $0x18] sm:$0xff]
        %vm328 = vcmask 261120
        %v330 = vsel %vm328, %v323, 0
        %332 = vmatpush.msra.mxu0 0.0
        %333 = vmatpush.msra.mxu0 0.0
        %334 = vmatpush.msra.mxu0 0.0
        %335 = vmatpush.msra.mxu0 0.0
        %336 = vmatpush.msra.mxu0 0.0
        %337 = vmatpush.msra.mxu0 0.0
        %338 = vmatpush.msra.mxu0 0.0
        %339 = vmatpush.msra.mxu0 0.0
        %340 = vmatpush.msra.mxu0 0.0
        %341 = vmatpush.msra.mxu0 0.0
        %342 = vmatpush.msra.mxu0 0.0
        %343 = vmatpush.msra.mxu0 0.0
        %344 = vmatpush.msra.mxu0 %v327
        %345 = vmatpush.msra.mxu0 %v326
        %346 = vmatpush.msra.mxu0 %v325
        %347 = vmatpush.msra.mxu0 %v324
        %348 = vmatmul.f32.gmra.mxu0 %v330
        %v349 = vpop.f32.mrf.mxu0
        %v350 = vadd.f32 0.0, %v349
        %351 = vdwg.mxu0
        %v352 = vld [vmem:[%s322] sm:$0x1]
        %v354 = vperm.slane %v352, 0
        %v356 = vmul.f32 %v350, %v354
        %v357 = vmax.f32 %v356, -0.999
        %v358 = vmin.f32 %v357, 0.999
        %v359 = vmul.f32 %v358, 64.0
        %s360 = smul.u32 %s28, 128
        %v361 = vlaneseq
        %v362 = vand.u32 %v361, 127
        %v363 = vstv %s360
        %v364 = vadd.s32 %v363, %v362
        %v365 = vld [vmem:[%s3] sm:$0xff]
        %366 = vset.pattern.permute.xlu0 0
        %367 = vperm.xlu0 %366, %v365
        %v368 = vpop.permute.xlu0 %367
        %vm369 = vcmp.eq.s32.totalorder %v364, %v368
        %v370 = vld [vmem:[%s4] sm:$0xff]
        %372 = vset.pattern.permute.xlu0 0
        %373 = vperm.xlu0 %372, %v370
        %v374 = vpop.permute.xlu0 %373
        %v376 = vsel %vm369, %v374, %v359
        %377 = vst [vmem:[%s312] sm:$0xff] %v376
        %v378 = vld [vmem:[%s5] sm:$0xff]
        %380 = vset.pattern.permute.xlu0 0
        %381 = vperm.xlu0 %380, %v378
        %v382 = vpop.permute.xlu0 %381
        %v384 = vsel %vm369, %v382, %v359
        %385 = vst [vmem:[%s319] sm:$0xff] %v384
        %s386 = sand.u32 %s172, 1
        %s387 = scalar_lea.sflag [#allocation4], %s386
        %s388 = sand.u32 %s172, 1
        %s389 = smul.addr %s388, 8
        %s390 = scalar_lea.vmem [#allocation5], %s389
        %s391 = sand.u32 %s198, 1
        %s392 = scalar_lea.sflag [#allocation7], %s391
        %s393 = sand.u32 %s198, 1
        %s394 = smul.addr %s393, 8
        %s395 = scalar_lea.vmem [#allocation6], %s394
        // Predicated region
        $region49: #{tpu_custom_call.1} parent=43 // pred_check
          %p396 = pneg %p182
        $region50: #{tpu_custom_call.1} parent=43 // pred_check_branch
          %398 = sbr.rel (%p396) target = $region52
        $region51: #{tpu_custom_call.1} parent=43 // pred_region
          %400 = vsyncadd %s387, 0
          %s401 = smul.addr %s28, 8
          %s402 = scalar_lea.hbm %s6, %s401
          %s404 = sshll.u32 %s390, 4
          %s405 = int_to_ptr.vmem [resolvable:$true] %s404
          %s406 = sshll.u32 %s402, 4
          %s407 = int_to_ptr.hbm [resolvable:$true] %s406
          %409 = dma.vmem_to_hbm [thread:$0]  %s405, 128, %s407, %s387
        $region52: #{tpu_custom_call.1} parent=43 // pred_fallthru
          _
        // Predicated region
        $region53: #{tpu_custom_call.1} parent=43 // pred_check
          %p410 = pneg %p208
        $region54: #{tpu_custom_call.1} parent=43 // pred_check_branch
          %412 = sbr.rel (%p410) target = $region56
        $region55: #{tpu_custom_call.1} parent=43 // pred_region
          %414 = vsyncadd %s392, 0
          %s415 = smul.addr %s28, 8
          %s416 = scalar_lea.hbm %s7, %s415
          %s418 = sshll.u32 %s395, 4
          %s419 = int_to_ptr.vmem [resolvable:$true] %s418
          %s420 = sshll.u32 %s416, 4
          %s421 = int_to_ptr.hbm [resolvable:$true] %s420
          %423 = dma.vmem_to_hbm [thread:$0]  %s419, 128, %s421, %s392
        $region56: #{tpu_custom_call.1} parent=43 // pred_fallthru
          _
      $region44: #{tpu_custom_call.1} parent=5 // pred_fallthru
        _
      %p424 = scmp.le.s32.totalorder 2, %s23
      // Predicated region
      $region57: #{tpu_custom_call.1} parent=5 // pred_check
        %p425 = pneg %p424
      $region58: #{tpu_custom_call.1} parent=5 // pred_check_branch
        %427 = sbr.rel (%p425) target = $region60
      $region59: #{tpu_custom_call.1} parent=5 // pred_region
        %s428 = ssub.s32 %s23, 2
        // Predicated region
        $region61: #{tpu_custom_call.1} parent=59 // pred_check
          %p429 = pneg %p188
        $region62: #{tpu_custom_call.1} parent=59 // pred_check_branch
          %431 = sbr.rel (%p429) target = $region64
        $region63: #{tpu_custom_call.1} parent=59 // pred_region
          %s432 = sand.u32 %s173, 1
          %s433 = scalar_lea.sflag [#allocation4], %s432
          %s434 = sand.u32 %s173, 1
          %s435 = smul.addr %s434, 8
          %s436 = scalar_lea.vmem [#allocation5], %s435
          %438 = dma.done %s433, 128
        $region64: #{tpu_custom_call.1} parent=59 // pred_fallthru
          _
        // Predicated region
        $region65: #{tpu_custom_call.1} parent=59 // pred_check
          %p439 = pneg %p214
        $region66: #{tpu_custom_call.1} parent=59 // pred_check_branch
          %441 = sbr.rel (%p439) target = $region68
        $region67: #{tpu_custom_call.1} parent=59 // pred_region
          %s442 = sand.u32 %s199, 1
          %s443 = scalar_lea.sflag [#allocation7], %s442
          %s444 = sand.u32 %s199, 1
          %s445 = smul.addr %s444, 8
          %s446 = scalar_lea.vmem [#allocation6], %s445
          %448 = dma.done %s443, 128
        $region68: #{tpu_custom_call.1} parent=59 // pred_fallthru
          _
      $region60: #{tpu_custom_call.1} parent=5 // pred_fallthru
        _
    $region6: #{tpu_custom_call.1} parent=1 // loop_footer
      %s27 = sadd.s32 1, %s23
    $region7: #{tpu_custom_call.1} parent=1 // loop_footer_branch
      %22 = sbr.rel target = $region3
    $region8: #{tpu_custom_call.1} parent=1 // loop_exit
      _
    %449 = vsyncpa [#allocation3], 1
    %s450 = scalar_lea.sflag [#allocation3], 1
    %451 = vsyncpa %s450, 1
    %452 = vsyncpa [#allocation4], 1
    %s453 = scalar_lea.sflag [#allocation4], 1
    %454 = vsyncpa %s453, 1
    %455 = vsyncpa [#allocation7], 1
    %s456 = scalar_lea.sflag [#allocation7], 1
    %457 = vsyncpa %s456, 1

</llo_original>
